<compile_context>
chip_gen: v5e
topology: v5e:2x2
jax: 0.10.0
libtpu: 0.0.40
codegen_flags: <defaults>
</compile_context>

<pallas_src>
import numpy as np
import jax
import jax.numpy as jnp
from jax import lax
from jax.experimental import pallas as pl
from jax.experimental.pallas import tpu as pltpu


def conv_relu_bn_kernel(w_ref, cols_ref, scale_ref, shift_ref, o_ref):
    # Conv2d as one MXU matmul: (Cout, Cin*KH*KW) @ (Cin*KH*KW, TN) -> (Cout, TN), f32 acc.
    acc = jnp.dot(w_ref[...], cols_ref[...], preferred_element_type=jnp.float32)
    # ReLU (VPU) + BatchNorm inference affine fused as the epilogue.
    acc = jnp.maximum(acc, 0.0)
    o_ref[...] = (acc * scale_ref[...] + shift_ref[...]).astype(o_ref.dtype)


def conv_relu_bn_forward(x, conv_w, gamma, beta, run_mean, run_var,
                         *, padding=1, stride=1, eps=1e-5, col_tile=256):
    """x: (B, Cin, H, W) NCHW f32; conv_w: (Cout, Cin, KH, KW); BN params: (Cout,)."""
    B, Cin, H, W = x.shape
    Cout, _, KH, KW = conv_w.shape
    OH = (H + 2 * padding - KH) // stride + 1
    OW = (W + 2 * padding - KW) // stride + 1
    N = B * OH * OW
    K = Cin * KH * KW

    # Transposed im2col: rows ordered (cin, kh, kw), columns ordered (b, oh, ow).
    xp = jnp.pad(x, ((0, 0), (0, 0), (padding, padding), (padding, padding)))
    wins = [xp[:, :,
               kh:kh + stride * (OH - 1) + 1:stride,
               kw:kw + stride * (OW - 1) + 1:stride]
            for kh in range(KH) for kw in range(KW)]          # each (B, Cin, OH, OW)
    cols = jnp.stack(wins, axis=2)                            # (B, Cin, KH*KW, OH, OW)
    cols = cols.transpose(1, 2, 0, 3, 4).reshape(K, N)        # (Cin*KH*KW, B*OH*OW)

    # Pad the lane (column) axis to a multiple of the tile so blocks are 128-aligned.
    tn = col_tile
    n_pad = pl.cdiv(N, tn) * tn
    if n_pad != N:
        cols = jnp.pad(cols, ((0, 0), (0, n_pad - N)))

    cols_bf = cols.astype(jnp.bfloat16)                       # halve patch HBM traffic
    w2 = conv_w.reshape(Cout, K).astype(jnp.bfloat16)         # (Cout, Cin*KH*KW)

    # BatchNorm (inference) folded to a single per-channel scale/shift, hoisted here.
    inv_std = 1.0 / jnp.sqrt(run_var + eps)
    scale = (gamma * inv_std).reshape(Cout, 1).astype(jnp.float32)
    shift = (beta - run_mean * gamma * inv_std).reshape(Cout, 1).astype(jnp.float32)

    grid = (n_pad // tn,)
    bytes_accessed = (cols_bf.size * 2 + w2.size * 2 + 2 * Cout * 4 + Cout * n_pad * 4)

    out = pl.pallas_call(
        conv_relu_bn_kernel,
        out_shape=jax.ShapeDtypeStruct((Cout, n_pad), jnp.float32),
        grid=grid,
        in_specs=[
            pl.BlockSpec((Cout, K), lambda j: (0, 0)),        # weights: resident
            pl.BlockSpec((K, tn), lambda j: (0, j)),          # patch columns: tiled
            pl.BlockSpec((Cout, 1), lambda j: (0, 0)),        # BN scale
            pl.BlockSpec((Cout, 1), lambda j: (0, 0)),        # BN shift
        ],
        out_specs=pl.BlockSpec((Cout, tn), lambda j: (0, j)), # lane-dense (256-wide) stores
        compiler_params=pltpu.CompilerParams(
            dimension_semantics=("parallel",)),
        cost_estimate=pl.CostEstimate(
            flops=2 * Cout * K * n_pad,
            transcendentals=0,
            bytes_accessed=bytes_accessed),
    )(w2, cols_bf, scale, shift)

    # (Cout, B*OH*OW) -> (B, Cout, OH, OW)  (NCHW, matching PyTorch)
    out = out[:, :N].reshape(Cout, B, OH, OW).transpose(1, 0, 2, 3)
    return out


def reference_forward(x, conv_w, gamma, beta, run_mean, run_var,
                      *, padding=1, stride=1, eps=1e-5):
    conv = lax.conv_general_dilated(
        x, conv_w, window_strides=(stride, stride),
        padding=((padding, padding), (padding, padding)),
        dimension_numbers=("NCHW", "OIHW", "NCHW"))
    relu = jnp.maximum(conv, 0.0)
    scale = gamma / jnp.sqrt(run_var + eps)
    shift = beta - run_mean * scale
    return relu * scale[None, :, None, None] + shift[None, :, None, None]


if __name__ == "__main__":
    key = jax.random.PRNGKey(0)
    k0, k1, k2, k3, k4, k5 = jax.random.split(key, 6)

    B, CH_IN, CH_OUT, H, W, KS, PAD, STRIDE = 2, 4, 32, 16, 16, 3, 1, 1

    x = jax.random.normal(k0, (B, CH_IN, H, W), jnp.float32)
    conv_w = jax.random.normal(k1, (CH_OUT, CH_IN, KS, KS), jnp.float32) * 0.1
    gamma = 1.0 + 0.1 * jax.random.normal(k2, (CH_OUT,), jnp.float32)
    beta = 0.1 * jax.random.normal(k3, (CH_OUT,), jnp.float32)
    run_mean = 0.1 * jax.random.normal(k4, (CH_OUT,), jnp.float32)
    run_var = jax.random.uniform(k5, (CH_OUT,), jnp.float32, minval=0.5, maxval=1.5)

    out = conv_relu_bn_forward(x, conv_w, gamma, beta, run_mean, run_var,
                               padding=PAD, stride=STRIDE)
    out = jax.block_until_ready(out)

    ref = reference_forward(x, conv_w, gamma, beta, run_mean, run_var,
                            padding=PAD, stride=STRIDE)
    # bf16 matmul inputs with f32 accumulation -> ~1e-3..1e-2 relative error budget.
    np.testing.assert_allclose(np.asarray(out), np.asarray(ref), rtol=2e-2, atol=3e-2)
    print("KERNEL_OK")
</pallas_src>

<mosaic_0001>
module attributes {stable_mosaic.version = 11 : i64} {
  func.func @conv_relu_bn_kernel(%arg0: i32, %arg1: memref<32x36xbf16, #tpu.memory_space<vmem>>, %arg2: memref<36x256xbf16, #tpu.memory_space<vmem>>, %arg3: memref<32x1xf32, #tpu.memory_space<vmem>>, %arg4: memref<32x1xf32, #tpu.memory_space<vmem>>, %arg5: memref<32x256xf32, #tpu.memory_space<vmem>>) attributes {dimension_semantics = [#tpu.dimension_semantics<parallel>], iteration_bounds = array<i64: 2>, scalar_prefetch = 0 : i64, scratch_operands = 0 : i64, tpu.core_type = #tpu.core_type<tc>, window_params = [{pipeline_mode = #tpu.pipeline_mode<synchronous>, transform_indices = @transform_0, window_bounds = array<i64: 32, 36>}, {transform_indices = @transform_1, window_bounds = array<i64: 36, 256>}, {pipeline_mode = #tpu.pipeline_mode<synchronous>, transform_indices = @transform_2, window_bounds = array<i64: 32, 1>}, {pipeline_mode = #tpu.pipeline_mode<synchronous>, transform_indices = @transform_3, window_bounds = array<i64: 32, 1>}, {transform_indices = @transform_4, window_bounds = array<i64: 32, 256>}]} {
    %c0 = arith.constant 0 : index
    %c0_0 = arith.constant 0 : index
    %0 = vector.load %arg1[%c0, %c0_0] : memref<32x36xbf16, #tpu.memory_space<vmem>>, vector<32x36xbf16>
    %c0_1 = arith.constant 0 : index
    %c0_2 = arith.constant 0 : index
    %1 = vector.load %arg2[%c0_1, %c0_2] : memref<36x256xbf16, #tpu.memory_space<vmem>>, vector<36x256xbf16>
    %cst = arith.constant dense<0.000000e+00> : vector<32x256xf32>
    %2 = tpu.matmul %0, %1, %cst {dimension_numbers = #tpu.dot_dimension_numbers<[1], [0], [0], [1], [0, 0, 1, 1], [], []>} : vector<32x36xbf16>, vector<36x256xbf16>, vector<32x256xf32> -> vector<32x256xf32>
    %cst_3 = arith.constant 0.000000e+00 : f32
    %3 = vector.broadcast %cst_3 : f32 to vector<32x256xf32>
    %4 = arith.maximumf %2, %3 : vector<32x256xf32>
    %c0_4 = arith.constant 0 : index
    %c0_5 = arith.constant 0 : index
    %5 = vector.load %arg3[%c0_4, %c0_5] : memref<32x1xf32, #tpu.memory_space<vmem>>, vector<32x1xf32>
    %6 = vector.broadcast %5 : vector<32x1xf32> to vector<32x256xf32>
    %7 = arith.mulf %4, %6 : vector<32x256xf32>
    %c0_6 = arith.constant 0 : index
    %c0_7 = arith.constant 0 : index
    %8 = vector.load %arg4[%c0_6, %c0_7] : memref<32x1xf32, #tpu.memory_space<vmem>>, vector<32x1xf32>
    %9 = vector.broadcast %8 : vector<32x1xf32> to vector<32x256xf32>
    %10 = arith.addf %7, %9 : vector<32x256xf32>
    %c0_8 = arith.constant 0 : index
    %c0_9 = arith.constant 0 : index
    %11 = vector.load %arg5[%c0_8, %c0_9] : memref<32x256xf32, #tpu.memory_space<vmem>>, vector<32x256xf32>
    tpu.vector_store %arg5[%c0_8, %c0_9], %10 {strides = array<i32>} : memref<32x256xf32, #tpu.memory_space<vmem>>, vector<32x256xf32>,
    return
  }
  func.func @transform_0(%arg0: i32) -> (i32, i32) {
    %c0_i32 = arith.constant 0 : i32
    %c0_i32_0 = arith.constant 0 : i32
    %c0_i32_1 = arith.constant 0 : i32
    return %c0_i32, %c0_i32_0 : i32, i32
  }
  func.func @transform_1(%arg0: i32) -> (i32, i32) {
    %c0_i32 = arith.constant 0 : i32
    %c0_i32_0 = arith.constant 0 : i32
    return %c0_i32, %arg0 : i32, i32
  }
  func.func @transform_2(%arg0: i32) -> (i32, i32) {
    %c0_i32 = arith.constant 0 : i32
    %c0_i32_0 = arith.constant 0 : i32
    %c0_i32_1 = arith.constant 0 : i32
    return %c0_i32, %c0_i32_0 : i32, i32
  }
  func.func @transform_3(%arg0: i32) -> (i32, i32) {
    %c0_i32 = arith.constant 0 : i32
    %c0_i32_0 = arith.constant 0 : i32
    %c0_i32_1 = arith.constant 0 : i32
    return %c0_i32, %c0_i32_0 : i32, i32
  }
  func.func @transform_4(%arg0: i32) -> (i32, i32) {
    %c0_i32 = arith.constant 0 : i32
    %c0_i32_0 = arith.constant 0 : i32
    return %c0_i32, %arg0 : i32, i32
  }
}

</mosaic_0001>

<llo_original>
// kernel: tpu_custom_call.1
$region0: #{tpu_custom_call.1}
  #allocation0 [shape = 'u32[]', space=smem, size = 0x4, offset = 0x4, fixed_abs, tag = 'smem constant byte address 0x4 - core index']
  #allocation1 [shape = 'u32[72,128]{1,0:T(1,128)}', space=vmem, size = 0x9000, scoped, tag = 'internal scratch']
  %s0 = inlined_call_operand.vmem [shape: bf16[32,36], index: 0, kind: input, shape index: {}]
  %s1 = inlined_call_operand.hbm [shape: bf16[36,512], index: 1, kind: input, shape index: {}]
  %s2 = inlined_call_operand.vmem [shape: f32[32,1], index: 2, kind: input, shape index: {}]
  %s3 = inlined_call_operand.vmem [shape: f32[32,1], index: 3, kind: input, shape index: {}]
  %s4 = inlined_call_operand.hbm [shape: f32[32,512], index: 4, kind: output, shape index: {}]
  %s5 = sld [smem:[#allocation0]]
  $region53: #{tpu_custom_call.1} parent=0
    _
  %s7 = ssub.s32 1, %s5
  %s8 = scalar_select 0, %s7, %s5
  $region1: #{tpu_custom_call.1} parent=0
    #allocation2 [shape = 'u8[40960]{0}', space=vmem, size = 0xa000, scoped, tag = 'input window, operand 1']
    #allocation3 [shape = 's32[2]{0}', space=sflag, size = 0x8, scoped, tag = 'scoped memory for tpu_custom_call.1']
    #allocation4 [shape = 's32[2]{0}', space=sflag, size = 0x8, scoped, tag = 'scoped memory for tpu_custom_call.1']
    #allocation5 [shape = 'u8[65536]{0}', space=vmem, size = 0x10000, scoped, tag = 'output window, operand 0']
    %9 = vsyncpa [#allocation3], 0
    %s10 = scalar_lea.sflag [#allocation3], 1
    %11 = vsyncpa %s10, 0
    %12 = vsyncpa [#allocation4], 0
    %s13 = scalar_lea.sflag [#allocation4], 1
    %14 = vsyncpa %s13, 0
    loop: start=0, step=1, limit=4
    $region2: #{tpu_custom_call.1} parent=1 // loop_pre_header
      _
    $region3: #{tpu_custom_call.1} parent=1 // loop_header
      %s16 = sphi 0, %s20
      %p17 = scmp.ge.s32.totalorder %s16, 4
      %s24 = sphi 0, %s24
      %s26 = sphi 0, %s24
      %s27 = sphi 0, %s26
      %s41 = sphi 0, %s27
      %s47 = sphi 0, %s49
      %s50 = sphi 0, %s47
      %s51 = sphi 0, %s50
      %s67 = sphi 0, %s51
      %s71 = sphi 0, %s71
      %s73 = sphi 0, %s71
      %s74 = sphi 0, %s73
      %s88 = sphi 0, %s74
      %s92 = sphi 0, %s92
      %s94 = sphi 0, %s92
      %s95 = sphi 0, %s94
      %s109 = sphi 0, %s95
      %s115 = sphi 0, %s117
      %s118 = sphi 0, %s115
      %s119 = sphi 0, %s118
      %s135 = sphi 0, %s119
    $region4: #{tpu_custom_call.1} parent=1 // loop_header_branch
      %19 = sbr.rel (%p17) target = $region8
    $region5: #{tpu_custom_call.1} parent=1 // loop_body
      %s21 = ssub.s32 %s16, 1
      %s22 = ssub.s32 %s16, 2
      %s23 = sadd.s32 %s16, 1
      %s25 = sadd.s32 %s24, 1
      %p28 = scmp.eq.s32.totalorder %s16, 1
      %p29 = scmp.ne.s32.totalorder %s24, %s26
      %p30 = scmp.eq.s32.totalorder %s16, 0
      %p31 = por %p29, %p30
      %p32 = scmp.ne.s32.totalorder %s24, %s26
      %p33 = scmp.eq.s32.totalorder %s21, 1
      %p34 = por %p32, %p33
      %p35 = scmp.ne.s32.totalorder %s26, %s27
      %p36 = scmp.eq.s32.totalorder %s21, 0
      %p37 = por %p35, %p36
      %p38 = scmp.ne.s32.totalorder %s26, %s27
      %p39 = scmp.eq.s32.totalorder %s22, 1
      %p40 = por %p38, %p39
      %p42 = scmp.ne.s32.totalorder %s27, %s41
      %p43 = scmp.eq.s32.totalorder %s22, 0
      %p44 = por %p42, %p43
      %s45 = ssub.s32 %s16, %s23
      %p46 = scmp.eq.s32.totalorder %s45, 0
      %s48 = sadd.s32 %s47, 1
      %s49 = scalar_select %p46, %s47, %s48
      %p52 = pneg %p46
      %p53 = scmp.eq.s32.totalorder %s16, 1
      %p54 = por %p52, %p53
      %p55 = scmp.ne.s32.totalorder %s47, %s50
      %p56 = scmp.eq.s32.totalorder %s16, 0
      %p57 = por %p55, %p56
      %p58 = scmp.ne.s32.totalorder %s47, %s50
      %p59 = scmp.eq.s32.totalorder %s21, 1
      %p60 = por %p58, %p59
      %p61 = scmp.ne.s32.totalorder %s50, %s51
      %p62 = scmp.eq.s32.totalorder %s21, 0
      %p63 = por %p61, %p62
      %p64 = scmp.ne.s32.totalorder %s50, %s51
      %p65 = scmp.eq.s32.totalorder %s22, 1
      %p66 = por %p64, %p65
      %p68 = scmp.ne.s32.totalorder %s51, %s67
      %p69 = scmp.eq.s32.totalorder %s22, 0
      %p70 = por %p68, %p69
      %s72 = sadd.s32 %s71, 1
      %p75 = scmp.eq.s32.totalorder %s16, 1
      %p76 = scmp.ne.s32.totalorder %s71, %s73
      %p77 = scmp.eq.s32.totalorder %s16, 0
      %p78 = por %p76, %p77
      %p79 = scmp.ne.s32.totalorder %s71, %s73
      %p80 = scmp.eq.s32.totalorder %s21, 1
      %p81 = por %p79, %p80
      %p82 = scmp.ne.s32.totalorder %s73, %s74
      %p83 = scmp.eq.s32.totalorder %s21, 0
      %p84 = por %p82, %p83
      %p85 = scmp.ne.s32.totalorder %s73, %s74
      %p86 = scmp.eq.s32.totalorder %s22, 1
      %p87 = por %p85, %p86
      %p89 = scmp.ne.s32.totalorder %s74, %s88
      %p90 = scmp.eq.s32.totalorder %s22, 0
      %p91 = por %p89, %p90
      %s93 = sadd.s32 %s92, 1
      %p96 = scmp.eq.s32.totalorder %s16, 1
      %p97 = scmp.ne.s32.totalorder %s92, %s94
      %p98 = scmp.eq.s32.totalorder %s16, 0
      %p99 = por %p97, %p98
      %p100 = scmp.ne.s32.totalorder %s92, %s94
      %p101 = scmp.eq.s32.totalorder %s21, 1
      %p102 = por %p100, %p101
      %p103 = scmp.ne.s32.totalorder %s94, %s95
      %p104 = scmp.eq.s32.totalorder %s21, 0
      %p105 = por %p103, %p104
      %p106 = scmp.ne.s32.totalorder %s94, %s95
      %p107 = scmp.eq.s32.totalorder %s22, 1
      %p108 = por %p106, %p107
      %p110 = scmp.ne.s32.totalorder %s95, %s109
      %p111 = scmp.eq.s32.totalorder %s22, 0
      %p112 = por %p110, %p111
      %s113 = ssub.s32 %s16, %s23
      %p114 = scmp.eq.s32.totalorder %s113, 0
      %s116 = sadd.s32 %s115, 1
      %s117 = scalar_select %p114, %s115, %s116
      %p120 = pneg %p114
      %p121 = scmp.eq.s32.totalorder %s16, 1
      %p122 = por %p120, %p121
      %p123 = scmp.ne.s32.totalorder %s115, %s118
      %p124 = scmp.eq.s32.totalorder %s16, 0
      %p125 = por %p123, %p124
      %p126 = scmp.ne.s32.totalorder %s115, %s118
      %p127 = scmp.eq.s32.totalorder %s21, 1
      %p128 = por %p126, %p127
      %p129 = scmp.ne.s32.totalorder %s118, %s119
      %p130 = scmp.eq.s32.totalorder %s21, 0
      %p131 = por %p129, %p130
      %p132 = scmp.ne.s32.totalorder %s118, %s119
      %p133 = scmp.eq.s32.totalorder %s22, 1
      %p134 = por %p132, %p133
      %p136 = scmp.ne.s32.totalorder %s119, %s135
      %p137 = scmp.eq.s32.totalorder %s22, 0
      %p138 = por %p136, %p137
      %p139 = scmp.le.s32.totalorder 1, %s16
      %p140 = scmp.lt.s32.totalorder %s16, 3
      %p141 = pnand %p139, %p140
      %p142 = pneg %p141
      // Predicated region
      $region9: #{tpu_custom_call.1} parent=5 // pred_check
        _
      $region10: #{tpu_custom_call.1} parent=5 // pred_check_branch
        %144 = sbr.rel (%p141) target = $region12
      $region11: #{tpu_custom_call.1} parent=5 // pred_region
        %s145 = ssub.s32 %s16, 1
        // Predicated region
        $region13: #{tpu_custom_call.1} parent=11 // pred_check
          %p146 = pneg %p37
        $region14: #{tpu_custom_call.1} parent=11 // pred_check_branch
          %148 = sbr.rel (%p146) target = $region16
        $region15: #{tpu_custom_call.1} parent=11 // pred_region
          _
        $region16: #{tpu_custom_call.1} parent=11 // pred_fallthru
          _
        // Predicated region
        $region17: #{tpu_custom_call.1} parent=11 // pred_check
          %p149 = pneg %p84
        $region18: #{tpu_custom_call.1} parent=11 // pred_check_branch
          %151 = sbr.rel (%p149) target = $region20
        $region19: #{tpu_custom_call.1} parent=11 // pred_region
          _
        $region20: #{tpu_custom_call.1} parent=11 // pred_fallthru
          _
        // Predicated region
        $region21: #{tpu_custom_call.1} parent=11 // pred_check
          %p152 = pneg %p105
        $region22: #{tpu_custom_call.1} parent=11 // pred_check_branch
          %154 = sbr.rel (%p152) target = $region24
        $region23: #{tpu_custom_call.1} parent=11 // pred_region
          _
        $region24: #{tpu_custom_call.1} parent=11 // pred_fallthru
          _
      $region12: #{tpu_custom_call.1} parent=5 // pred_fallthru
        _
      %p155 = scmp.lt.s32.totalorder %s16, 2
      // Predicated region
      $region25: #{tpu_custom_call.1} parent=5 // pred_check
        %p156 = pneg %p155
      $region26: #{tpu_custom_call.1} parent=5 // pred_check_branch
        %158 = sbr.rel (%p156) target = $region28
      $region27: #{tpu_custom_call.1} parent=5 // pred_region
        // Predicated region
        $region29: #{tpu_custom_call.1} parent=27 // pred_check
          %p159 = pneg %p57
        $region30: #{tpu_custom_call.1} parent=27 // pred_check_branch
          %161 = sbr.rel (%p159) target = $region32
        $region31: #{tpu_custom_call.1} parent=27 // pred_region
          %s162 = sand.u32 %s47, 1
          %s163 = scalar_lea.sflag [#allocation3], %s162
          %s164 = sand.u32 %s47, 1
          %s165 = smul.addr %s164, 40
          %s166 = scalar_lea.vmem [#allocation2], %s165
          %s167 = smul.u32 2, %s16
          %169 = vsyncadd %s163, 0
          %s170 = smul.addr %s167, 4
          %s171 = scalar_lea.hbm %s1, %s170
          %s172 = sshll.u32 %s171, 4
          %s173 = int_to_ptr.hbm [resolvable:$true] %s172
          %s174 = sshll.u32 %s166, 4
          %s175 = int_to_ptr.vmem [resolvable:$true] %s174
          %180 = dma.hbm_to_vmem [thread:$0]  %s173, 640, %s175, %s163, 256, 128, 8
        $region32: #{tpu_custom_call.1} parent=27 // pred_fallthru
          _
      $region28: #{tpu_custom_call.1} parent=5 // pred_fallthru
        _
      %p181 = scmp.le.s32.totalorder 1, %s16
      %p182 = scmp.lt.s32.totalorder %s16, 3
      %p183 = pnand %p181, %p182
      %p184 = pneg %p183
      // Predicated region
      $region33: #{tpu_custom_call.1} parent=5 // pred_check
        _
      $region34: #{tpu_custom_call.1} parent=5 // pred_check_branch
        %186 = sbr.rel (%p183) target = $region36
      $region35: #{tpu_custom_call.1} parent=5 // pred_region
        %s187 = ssub.s32 %s16, 1
        %s188 = sand.u32 %s50, 1
        %s189 = scalar_lea.sflag [#allocation3], %s188
        %s190 = sand.u32 %s50, 1
        %s191 = smul.addr %s190, 40
        %s192 = scalar_lea.vmem [#allocation2], %s191
        // Predicated region
        $region37: #{tpu_custom_call.1} parent=35 // pred_check
          %p193 = pneg %p63
        $region38: #{tpu_custom_call.1} parent=35 // pred_check_branch
          %195 = sbr.rel (%p193) target = $region40
        $region39: #{tpu_custom_call.1} parent=35 // pred_region
          %197 = dma.done %s189, 640
        $region40: #{tpu_custom_call.1} parent=35 // pred_fallthru
          _
        %p198 = pneg %p37
        %p199 = pneg %p34
        %s200 = sand.u32 %s50, 1
        %s201 = scalar_lea.sflag [#allocation3], %s200
        %s202 = sand.u32 %s50, 1
        %s203 = smul.addr %s202, 40
        %s204 = scalar_lea.vmem [#allocation2], %s203
        %p205 = pneg %p63
        %p206 = pneg %p60
        %p207 = pneg %p84
        %p208 = pneg %p81
        %p209 = pneg %p105
        %p210 = pneg %p102
        %p211 = pneg %p131
        %p212 = pneg %p128
        %s213 = sand.u32 %s118, 1
        %s214 = scalar_lea.sflag [#allocation4], %s213
        %s215 = sand.u32 %s118, 1
        %s216 = smul.addr %s215, 64
        %s217 = scalar_lea.vmem [#allocation5], %s216
        %s218 = smul.u32 2, %s21
        %s219 = smul.u32 2, %s21
        %v221 = vld [vmem:[%s0] sm:$0xf]
        %v222 = vld [vmem:[%s0 + $0x4] sm:$0xf]
        %v223 = vld [vmem:[%s0 + $0x8] sm:$0xf]
        %v224 = vld [vmem:[%s0 + $0xc] sm:$0xf]
        %v225 = vld [vmem:[%s192] sm:$0xff]
        %v226 = vld [vmem:[%s192 + $0x8] sm:$0xff]
        %v227 = vld [vmem:[%s192 + $0x10] sm:$0xff]
        %v228 = vld [vmem:[%s192 + $0x18] sm:$0xff]
        %v229 = vld [vmem:[%s192 + $0x20] sm:$0x33]
        %v234 = vunpack.c.l.b16 %v221
        %v235 = vunpack.c.l.b16 %v222
        %v236 = vunpack.c.l.b16 %v223
        %v237 = vunpack.c.l.b16 %v224
        %v238 = vpack.c.b16 %v235, %v234
        %v239 = vpack.c.b16 %v237, %v236
        %v245 = vunpack.c.l.b16 %v225
        %v246 = vunpack.c.h.b16 %v225
        %v247 = vunpack.c.l.b16 %v226
        %v248 = vunpack.c.h.b16 %v226
        %v249 = vunpack.c.l.b16 %v227
        %v250 = vunpack.c.h.b16 %v227
        %v251 = vunpack.c.l.b16 %v228
        %v252 = vunpack.c.h.b16 %v228
        %v253 = vunpack.c.l.b16 %v229
        %v254 = vunpack.c.h.b16 %v229
        %v255 = vpack.c.b16 %v247, %v245
        %v256 = vpack.c.b16 %v248, %v246
        %v257 = vpack.c.b16 %v251, %v249
        %v258 = vpack.c.b16 %v252, %v250
        %v259 = vpack.c.b16 %v253, %v253
        %v260 = vpack.c.b16 %v254, %v254
        %vm265 = vcmask 293888
        %v267 = vsel %vm265, %v238, 0
        %v270 = vsel %vm265, %v239, 0
        %vm272 = vcmask 1041408
        %v274 = vsel %vm272, %v259, 0
        %v277 = vsel %vm272, %v260, 0
        %279 = vmatpush.bf16.msra.mxu0 0
        %280 = vmatpush.bf16.msra.mxu0 0
        %281 = vmatpush.bf16.msra.mxu0 0
        %282 = vmatpush.bf16.msra.mxu0 0
        %283 = vmatpush.bf16.msra.mxu0 0
        %284 = vmatpush.bf16.msra.mxu0 %v274
        %285 = vmatpush.bf16.msra.mxu0 %v257
        %286 = vmatpush.bf16.msra.mxu0 %v255
        %287 = vmatmul.bf16.gmra.mxu0 %v267
        %v288 = vpop.f32.mrf.mxu0
        %v289 = vadd.f32 0.0, %v288
        %v290 = vpop.f32.mrf.mxu0
        %v291 = vadd.f32 0.0, %v290
        %292 = vmatmul.bf16.gmra.mxu0 %v270
        %v293 = vpop.f32.mrf.mxu0
        %v294 = vadd.f32 0.0, %v293
        %v295 = vpop.f32.mrf.mxu0
        %v296 = vadd.f32 0.0, %v295
        %297 = vdwg.mxu0
        %298 = vmatpush.bf16.msra.mxu0 0
        %299 = vmatpush.bf16.msra.mxu0 0
        %300 = vmatpush.bf16.msra.mxu0 0
        %301 = vmatpush.bf16.msra.mxu0 0
        %302 = vmatpush.bf16.msra.mxu0 0
        %303 = vmatpush.bf16.msra.mxu0 %v277
        %304 = vmatpush.bf16.msra.mxu0 %v258
        %305 = vmatpush.bf16.msra.mxu0 %v256
        %306 = vmatmul.bf16.gmra.mxu0 %v267
        %v307 = vpop.f32.mrf.mxu0
        %v308 = vadd.f32 0.0, %v307
        %v309 = vpop.f32.mrf.mxu0
        %v310 = vadd.f32 0.0, %v309
        %311 = vmatmul.bf16.gmra.mxu0 %v270
        %v312 = vpop.f32.mrf.mxu0
        %v313 = vadd.f32 0.0, %v312
        %v314 = vpop.f32.mrf.mxu0
        %v315 = vadd.f32 0.0, %v314
        %316 = vdwg.mxu0
        %v317 = vmax.f32 %v289, 0.0
        %v318 = vmax.f32 %v308, 0.0
        %v319 = vmax.f32 %v291, 0.0
        %v320 = vmax.f32 %v310, 0.0
        %v321 = vmax.f32 %v294, 0.0
        %v322 = vmax.f32 %v313, 0.0
        %v323 = vmax.f32 %v296, 0.0
        %v324 = vmax.f32 %v315, 0.0
        %v325 = vld [vmem:[%s2] sm:$0xff]
        %v326 = vld [vmem:[%s2 + $0x8] sm:$0xff]
        %v327 = vld [vmem:[%s2 + $0x10] sm:$0xff]
        %v328 = vld [vmem:[%s2 + $0x18] sm:$0xff]
        %330 = vset.pattern.permute.xlu0 0
        %331 = vperm.xlu0 %330, %v325
        %v332 = vpop.permute.xlu0 %331
        %335 = vset.pattern.permute.xlu0 0
        %336 = vperm.xlu0 %335, %v326
        %v337 = vpop.permute.xlu0 %336
        %340 = vset.pattern.permute.xlu0 0
        %341 = vperm.xlu0 %340, %v327
        %v342 = vpop.permute.xlu0 %341
        %345 = vset.pattern.permute.xlu0 0
        %346 = vperm.xlu0 %345, %v328
        %v347 = vpop.permute.xlu0 %346
        %v349 = vmul.f32 %v317, %v332
        %v350 = vmul.f32 %v318, %v332
        %v351 = vmul.f32 %v319, %v337
        %v352 = vmul.f32 %v320, %v337
        %v353 = vmul.f32 %v321, %v342
        %v354 = vmul.f32 %v322, %v342
        %v355 = vmul.f32 %v323, %v347
        %v356 = vmul.f32 %v324, %v347
        %v357 = vld [vmem:[%s3] sm:$0xff]
        %v358 = vld [vmem:[%s3 + $0x8] sm:$0xff]
        %v359 = vld [vmem:[%s3 + $0x10] sm:$0xff]
        %v360 = vld [vmem:[%s3 + $0x18] sm:$0xff]
        %362 = vset.pattern.permute.xlu0 0
        %363 = vperm.xlu0 %362, %v357
        %v364 = vpop.permute.xlu0 %363
        %367 = vset.pattern.permute.xlu0 0
        %368 = vperm.xlu0 %367, %v358
        %v369 = vpop.permute.xlu0 %368
        %372 = vset.pattern.permute.xlu0 0
        %373 = vperm.xlu0 %372, %v359
        %v374 = vpop.permute.xlu0 %373
        %377 = vset.pattern.permute.xlu0 0
        %378 = vperm.xlu0 %377, %v360
        %v379 = vpop.permute.xlu0 %378
        %v381 = vadd.f32 %v349, %v364
        %v382 = vadd.f32 %v350, %v364
        %v383 = vadd.f32 %v351, %v369
        %v384 = vadd.f32 %v352, %v369
        %v385 = vadd.f32 %v353, %v374
        %v386 = vadd.f32 %v354, %v374
        %v387 = vadd.f32 %v355, %v379
        %v388 = vadd.f32 %v356, %v379
        %389 = vst [vmem:[%s217] sm:$0xff] %v381
        %390 = vst [vmem:[%s217 + $0x8] sm:$0xff] %v382
        %391 = vst [vmem:[%s217 + $0x10] sm:$0xff] %v383
        %392 = vst [vmem:[%s217 + $0x18] sm:$0xff] %v384
        %393 = vst [vmem:[%s217 + $0x20] sm:$0xff] %v385
        %394 = vst [vmem:[%s217 + $0x28] sm:$0xff] %v386
        %395 = vst [vmem:[%s217 + $0x30] sm:$0xff] %v387
        %396 = vst [vmem:[%s217 + $0x38] sm:$0xff] %v388
        %s397 = sand.u32 %s118, 1
        %s398 = scalar_lea.sflag [#allocation4], %s397
        %s399 = sand.u32 %s118, 1
        %s400 = smul.addr %s399, 64
        %s401 = scalar_lea.vmem [#allocation5], %s400
        // Predicated region
        $region41: #{tpu_custom_call.1} parent=35 // pred_check
          %p402 = pneg %p128
        $region42: #{tpu_custom_call.1} parent=35 // pred_check_branch
          %404 = sbr.rel (%p402) target = $region44
        $region43: #{tpu_custom_call.1} parent=35 // pred_region
          %s405 = smul.u32 2, %s21
          %407 = vsyncadd %s398, 0
          %s408 = smul.addr %s405, 8
          %s409 = scalar_lea.hbm %s4, %s408
          %s410 = sshll.u32 %s401, 4
          %s411 = int_to_ptr.vmem [resolvable:$true] %s410
          %s412 = sshll.u32 %s409, 4
          %s413 = int_to_ptr.hbm [resolvable:$true] %s412
          %418 = dma.vmem_to_hbm [thread:$0]  %s411, 1024, %s413, %s398, 256, 512, 16
        $region44: #{tpu_custom_call.1} parent=35 // pred_fallthru
          _
      $region36: #{tpu_custom_call.1} parent=5 // pred_fallthru
        _
      %p419 = scmp.le.s32.totalorder 2, %s16
      // Predicated region
      $region45: #{tpu_custom_call.1} parent=5 // pred_check
        %p420 = pneg %p419
      $region46: #{tpu_custom_call.1} parent=5 // pred_check_branch
        %422 = sbr.rel (%p420) target = $region48
      $region47: #{tpu_custom_call.1} parent=5 // pred_region
        %s423 = ssub.s32 %s16, 2
        // Predicated region
        $region49: #{tpu_custom_call.1} parent=47 // pred_check
          %p424 = pneg %p134
        $region50: #{tpu_custom_call.1} parent=47 // pred_check_branch
          %426 = sbr.rel (%p424) target = $region52
        $region51: #{tpu_custom_call.1} parent=47 // pred_region
          %s427 = sand.u32 %s119, 1
          %s428 = scalar_lea.sflag [#allocation4], %s427
          %s429 = sand.u32 %s119, 1
          %s430 = smul.addr %s429, 64
          %s431 = scalar_lea.vmem [#allocation5], %s430
          %433 = dma.done %s428, 1024
        $region52: #{tpu_custom_call.1} parent=47 // pred_fallthru
          _
      $region48: #{tpu_custom_call.1} parent=5 // pred_fallthru
        _
    $region6: #{tpu_custom_call.1} parent=1 // loop_footer
      %s20 = sadd.s32 1, %s16
    $region7: #{tpu_custom_call.1} parent=1 // loop_footer_branch
      %15 = sbr.rel target = $region3
    $region8: #{tpu_custom_call.1} parent=1 // loop_exit
      _
    %434 = vsyncpa [#allocation3], 1
    %s435 = scalar_lea.sflag [#allocation3], 1
    %436 = vsyncpa %s435, 1
    %437 = vsyncpa [#allocation4], 1
    %s438 = scalar_lea.sflag [#allocation4], 1
    %439 = vsyncpa %s438, 1

</llo_original>
